<compile_context>
chip_gen: v5e
topology: v5e:2x2
jax: 0.10.0
libtpu: 0.0.40
codegen_flags: <defaults>
</compile_context>

<pallas_src>
import jax
import jax.numpy as jnp
import numpy as np
from jax.experimental import pallas as pl
from jax.experimental.pallas import tpu as pltpu

HIDDEN = 32


# ----------------------------- Pallas kernels --------------------------------
def feat_transform_kernel(h_ref, w_ref, z_ref):
    """Z = H @ W (row-tiled), hoisted out of the A-reduction loop."""
    z_ref[...] = jnp.dot(h_ref[...].astype(jnp.bfloat16), w_ref[...],
                         preferred_element_type=jnp.float32).astype(z_ref.dtype)


def gcn_layer_kernel(cols_ref, cnt_ref, a_ref, z_ref, b_ref, out_ref, acc_ref):
    """out_i = tanh( sum_k A[i, cols[i,k]] @ Z[cols[i,k]] + b ).

    The k grid axis walks only the *nonzero* A_hat tile columns of row tile i
    (remapped in the index_maps from the scalar-prefetched schedule), so zero
    tiles cost neither DMA nor MXU work.
    """
    i = pl.program_id(0)
    k = pl.program_id(1)

    @pl.when(k == 0)
    def _():
        acc_ref[...] = jnp.zeros_like(acc_ref)

    # Tail guard: entries k >= counts[i] are padding.  They alias the last
    # valid column, so the pipeline re-uses the already-fetched tile (no new
    # DMA); just skip the MXU push.
    @pl.when(k < cnt_ref[i])
    def _():
        acc_ref[...] += jnp.dot(a_ref[...], z_ref[...],
                                preferred_element_type=jnp.float32)

    @pl.when(k == pl.num_programs(1) - 1)
    def _():
        out_ref[...] = jnp.tanh(acc_ref[...] + b_ref[...]).astype(out_ref.dtype)


def pool_classify_kernel(p_ref, h_ref, wc_ref, bc_ref, out_ref, acc_ref):
    """global_mean_pool (P @ H, K-reduction over node tiles) + Linear."""
    k = pl.program_id(0)

    @pl.when(k == 0)
    def _():
        acc_ref[...] = jnp.zeros_like(acc_ref)

    acc_ref[...] += jnp.dot(p_ref[...], h_ref[...],
                            preferred_element_type=jnp.float32)

    # dropout(p=0.5): identity in eval mode.
    # TODO(synk): training-mode stochastic dropout not implemented.
    @pl.when(k == pl.num_programs(0) - 1)
    def _():
        out_ref[...] = (jnp.dot(acc_ref[...], wc_ref[...],
                                preferred_element_type=jnp.float32)
                        + bc_ref[...])


# ----------------------------- kernel wrappers --------------------------------
def feat_transform_pallas(h, w_bf16, *, tm):
    n, f_in = h.shape
    ni = n // tm
    return pl.pallas_call(
        feat_transform_kernel,
        out_shape=jax.ShapeDtypeStruct((n, HIDDEN), jnp.bfloat16),
        grid_spec=pltpu.PrefetchScalarGridSpec(
            num_scalar_prefetch=0,
            grid=(ni,),
            in_specs=[
                pl.BlockSpec((tm, f_in), lambda i: (i, 0)),
                pl.BlockSpec((f_in, HIDDEN), lambda i: (0, 0)),
            ],
            out_specs=pl.BlockSpec((tm, HIDDEN), lambda i: (i, 0)),
        ),
        compiler_params=pltpu.CompilerParams(
            dimension_semantics=("parallel",)),
    )(h, w_bf16)


def gcn_layer_pallas(cols, counts, kmax, nnz_tiles, a_bf16, z_bf16, b, *, tm, tk):
    n = a_bf16.shape[0]
    ni = n // tm

    # VMEM budget: double-buffered tiles + accumulator, floored at the 32 MiB
    # default and capped at 48 MiB so the same config fits v7x's 64 MiB.
    tile_bytes = (2 * (tm * tk * 2 + tk * HIDDEN * 2 + tm * HIDDEN * 4)
                  + tm * HIDDEN * 4)
    vmem_limit = int(min(max(tile_bytes + (8 << 20), 32 << 20), 48 << 20))

    cost = pl.CostEstimate(
        flops=2 * nnz_tiles * tm * tk * HIDDEN,
        transcendentals=n * HIDDEN,
        bytes_accessed=(nnz_tiles * tm * tk * 2 + nnz_tiles * tk * HIDDEN * 2
                        + n * HIDDEN * 4 + HIDDEN * 4),
    )

    def a_map(i, k, cols_ref, cnt_ref):        # nonzero-column remap -> DMA skip
        return (i, cols_ref[i * kmax + k])

    def z_map(i, k, cols_ref, cnt_ref):
        return (cols_ref[i * kmax + k], 0)

    grid_spec = pltpu.PrefetchScalarGridSpec(
        num_scalar_prefetch=2,
        grid=(ni, kmax),
        in_specs=[
            pl.BlockSpec((tm, tk), a_map),                           # A_hat tile
            pl.BlockSpec((tk, HIDDEN), z_map),                       # Z rows
            pl.BlockSpec((1, HIDDEN), lambda i, k, c, t: (0, 0)),    # bias
        ],
        out_specs=pl.BlockSpec((tm, HIDDEN), lambda i, k, c, t: (i, 0)),
        scratch_shapes=[pltpu.VMEM((tm, HIDDEN), jnp.float32)],
    )

    # Row-tile axis "parallel" shards across both TensorCores on v7x (no-op on
    # single-TC v5e/v6e); equal graph sizes keep the nonzero-tile load balanced.
    return pl.pallas_call(
        gcn_layer_kernel,
        out_shape=jax.ShapeDtypeStruct((n, HIDDEN), jnp.float32),
        grid_spec=grid_spec,
        compiler_params=pltpu.CompilerParams(
            dimension_semantics=("parallel", "arbitrary"),
            vmem_limit_bytes=vmem_limit,
        ),
        cost_estimate=cost,
    )(cols, counts, a_bf16, z_bf16, b)


def pool_classify_pallas(pool_mat, h, wc, bc, *, tk):
    g, n = pool_mat.shape
    n_out = wc.shape[1]
    nk = n // tk

    grid_spec = pltpu.PrefetchScalarGridSpec(
        num_scalar_prefetch=0,
        grid=(nk,),
        in_specs=[
            pl.BlockSpec((g, tk), lambda k: (0, k)),         # P column tile
            pl.BlockSpec((tk, HIDDEN), lambda k: (k, 0)),    # H row tile
            pl.BlockSpec((HIDDEN, n_out), lambda k: (0, 0)),
            pl.BlockSpec((1, n_out), lambda k: (0, 0)),
        ],
        out_specs=pl.BlockSpec((g, n_out), lambda k: (0, 0)),
        scratch_shapes=[pltpu.VMEM((g, HIDDEN), jnp.float32)],
    )
    return pl.pallas_call(
        pool_classify_kernel,
        out_shape=jax.ShapeDtypeStruct((g, n_out), jnp.float32),
        grid_spec=grid_spec,
        compiler_params=pltpu.CompilerParams(
            dimension_semantics=("arbitrary",)),
    )(pool_mat, h, wc, bc)


def build_tile_schedule(a_hat_padded, tile):
    """Compacted per-row-tile list of nonzero A_hat tile columns.

    Returns (cols_flat[int32, ni*kmax], counts[int32, ni], kmax, nnz_tiles).
    Padding entries repeat the last valid column (their DMA is dedup'd by the
    pipeline); the kernel masks them with k < counts[i].  1D SMEM arrays avoid
    the 2D SMEM padding blowup.
    """
    n = a_hat_padded.shape[0]
    ni = n // tile
    mask = np.asarray(
        jnp.abs(a_hat_padded).reshape(ni, tile, ni, tile).sum(axis=(1, 3)) > 0)
    counts = mask.sum(axis=1).astype(np.int32)
    kmax = max(int(counts.max()), 1)
    cols = np.zeros((ni, kmax), np.int32)
    for i in range(ni):
        nz = np.nonzero(mask[i])[0].astype(np.int32)
        if nz.size:
            cols[i, :nz.size] = nz
            cols[i, nz.size:] = nz[-1]
    return (jnp.asarray(cols.reshape(-1)), jnp.asarray(counts),
            kmax, int(counts.sum()))


def gcn_forward_pallas(a_hat, x, params, pool_mat, *, tile=512):
    """Full forward: 3x (GCNConv + tanh) -> mean pool -> dropout(eval) -> Linear."""
    (w1, b1), (w2, b2), (w3, b3), (wc, bc) = params

    n = a_hat.shape[0]
    n_pad = ((n + tile - 1) // tile) * tile
    pad = n_pad - n
    if pad:
        # Padded A_hat columns and pool_mat columns are zero, so whatever the
        # padded H rows contain never flows into real rows or the pooling.
        a_hat = jnp.pad(a_hat, ((0, pad), (0, pad)))
        x = jnp.pad(x, ((0, pad), (0, 0)))
        pool_mat = jnp.pad(pool_mat, ((0, 0), (0, pad)))

    # Nonzero-tile schedule (graph batches give a block-diagonal A_hat) -> the
    # layer kernel skips zero tiles at the DMA level, not just the MXU level.
    cols, counts, kmax, nnz_tiles = build_tile_schedule(a_hat, tile)

    # bf16 A_hat halves the dominant HBM stream; MXU accumulates in f32.
    # TODO(synk): int8 (v5e/v6e) / fp8-e4m3 (v7x) A_hat would halve it again.
    a_bf16 = a_hat.astype(jnp.bfloat16)

    h = x
    for (w, b) in ((w1, b1), (w2, b2), (w3, b3)):
        # Z = H @ W computed once per layer (stored bf16) instead of being
        # recomputed for every row tile inside the SpMM reduction.
        z = feat_transform_pallas(h, w.astype(jnp.bfloat16), tm=tile)
        h = gcn_layer_pallas(cols, counts, kmax, nnz_tiles, a_bf16, z, b,
                             tm=tile, tk=tile)

    # TODO(synk): pooling/classifier could be fused into layer 3's k==last
    # epilogue to save one launch + an HBM roundtrip of H3.
    return pool_classify_pallas(pool_mat, h, wc, bc, tk=tile)


# ------------------------------ JAX glue -------------------------------------
def build_normalized_adjacency(edge_index, num_nodes):
    """A_hat = D^-1/2 (A + I) D^-1/2 (GCNConv default normalization).
    Assumes edge_index is deduplicated (matches PyG semantics)."""
    src, dst = edge_index[0], edge_index[1]
    adj = jnp.zeros((num_nodes, num_nodes), jnp.float32)
    adj = adj.at[dst, src].add(1.0)
    adj = adj + jnp.eye(num_nodes, dtype=jnp.float32)
    deg = adj.sum(axis=1)
    d_inv_sqrt = jnp.where(deg > 0, 1.0 / jnp.sqrt(deg), 0.0)
    return adj * d_inv_sqrt[:, None] * d_inv_sqrt[None, :]


def build_pool_matrix(batch, num_graphs):
    """P[g, n] = 1/count_g if batch[n] == g else 0  (global_mean_pool)."""
    onehot = (batch[None, :] == jnp.arange(num_graphs)[:, None]).astype(jnp.float32)
    counts = onehot.sum(axis=1, keepdims=True)
    return onehot / jnp.maximum(counts, 1.0)


def glorot(key, fan_in, fan_out):
    limit = jnp.sqrt(6.0 / (fan_in + fan_out))
    return jax.random.uniform(key, (fan_in, fan_out), jnp.float32, -limit, limit)


def init_params(key):
    k = jax.random.split(key, 4)
    # GCNConv(6, 32), GCNConv(32, 32), GCNConv(32, 32), Linear(32, 6)
    w1, b1 = glorot(k[0], 6, HIDDEN),      jnp.zeros((1, HIDDEN), jnp.float32)
    w2, b2 = glorot(k[1], HIDDEN, HIDDEN), jnp.zeros((1, HIDDEN), jnp.float32)
    w3, b3 = glorot(k[2], HIDDEN, HIDDEN), jnp.zeros((1, HIDDEN), jnp.float32)
    wc, bc = glorot(k[3], HIDDEN, 6),      jnp.zeros((1, 6), jnp.float32)
    return ((w1, b1), (w2, b2), (w3, b3), (wc, bc))


def gcn_reference(a_hat, x, params, pool_mat):
    (w1, b1), (w2, b2), (w3, b3), (wc, bc) = params
    h = jnp.tanh(a_hat @ (x @ w1) + b1)
    h = jnp.tanh(a_hat @ (h @ w2) + b2)
    h = jnp.tanh(a_hat @ (h @ w3) + b3)
    pooled = pool_mat @ h
    return pooled @ wc + bc


# ------------------------------- main ----------------------------------------
if __name__ == "__main__":
    key = jax.random.PRNGKey(0)
    k_x, k_p = jax.random.split(key)

    # Synthetic batch: 2 ring graphs of 380 nodes each (N=760, padded to 768 =
    # 3 x 256 tiles).  7 of the 9 (256,256) A_hat tiles are nonzero; the 2
    # zero tiles are skipped at the DMA level via the prefetched schedule, and
    # the multi-k accumulation + tail-guard paths are all exercised.
    N_G, G, F_IN = 380, 2, 6
    N = N_G * G
    x = jax.random.normal(k_x, (N, F_IN), jnp.float32)

    edges = []
    for g in range(G):
        base = g * N_G
        for i in range(N_G):
            j = (i + 1) % N_G
            edges.append((base + i, base + j))
            edges.append((base + j, base + i))
    edge_index = jnp.array(edges, dtype=jnp.int32).T            # [2, E]
    batch = jnp.repeat(jnp.arange(G, dtype=jnp.int32), N_G)     # [N]

    a_hat = build_normalized_adjacency(edge_index, N)           # [N, N]
    pool_mat = build_pool_matrix(batch, G)                      # [G, N]
    params = init_params(k_p)

    out = jax.block_until_ready(
        gcn_forward_pallas(a_hat, x, params, pool_mat, tile=256))
    ref = gcn_reference(a_hat, x, params, pool_mat)

    assert out.shape == (G, 6)
    max_err = float(jnp.max(jnp.abs(out - ref)))
    # bf16 A_hat / Z (f32 accumulation) over 3 stacked layers -> loosened tol.
    assert jnp.allclose(out, ref, atol=3e-2, rtol=3e-2), f"max abs err {max_err}"

    print("KERNEL_OK")
</pallas_src>

<mosaic_0001>
module attributes {stable_mosaic.version = 11 : i64} {
  func.func @feat_transform_kernel(%arg0: i32, %arg1: memref<256x6xf32, #tpu.memory_space<vmem>>, %arg2: memref<6x32xbf16, #tpu.memory_space<vmem>>, %arg3: memref<256x32xbf16, #tpu.memory_space<vmem>>) attributes {dimension_semantics = [#tpu.dimension_semantics<parallel>], iteration_bounds = array<i64: 3>, scalar_prefetch = 0 : i64, scratch_operands = 0 : i64, tpu.core_type = #tpu.core_type<tc>, window_params = [{transform_indices = @transform_0, window_bounds = array<i64: 256, 6>}, {pipeline_mode = #tpu.pipeline_mode<synchronous>, transform_indices = @transform_1, window_bounds = array<i64: 6, 32>}, {transform_indices = @transform_2, window_bounds = array<i64: 256, 32>}]} {
    %c0 = arith.constant 0 : index
    %c0_0 = arith.constant 0 : index
    %0 = vector.load %arg1[%c0, %c0_0] : memref<256x6xf32, #tpu.memory_space<vmem>>, vector<256x6xf32>
    %1 = arith.truncf %0 : vector<256x6xf32> to vector<256x6xbf16>
    %c0_1 = arith.constant 0 : index
    %c0_2 = arith.constant 0 : index
    %2 = vector.load %arg2[%c0_1, %c0_2] : memref<6x32xbf16, #tpu.memory_space<vmem>>, vector<6x32xbf16>
    %cst = arith.constant dense<0.000000e+00> : vector<256x32xf32>
    %3 = tpu.matmul %1, %2, %cst {dimension_numbers = #tpu.dot_dimension_numbers<[1], [0], [0], [1], [0, 0, 1, 1], [], []>} : vector<256x6xbf16>, vector<6x32xbf16>, vector<256x32xf32> -> vector<256x32xf32>
    %4 = arith.truncf %3 : vector<256x32xf32> to vector<256x32xbf16>
    %c0_3 = arith.constant 0 : index
    %c0_4 = arith.constant 0 : index
    %5 = vector.load %arg3[%c0_3, %c0_4] : memref<256x32xbf16, #tpu.memory_space<vmem>>, vector<256x32xbf16>
    tpu.vector_store %arg3[%c0_3, %c0_4], %4 {strides = array<i32>} : memref<256x32xbf16, #tpu.memory_space<vmem>>, vector<256x32xbf16>,
    return
  }
  func.func @transform_0(%arg0: i32) -> (i32, i32) {
    %c0_i32 = arith.constant 0 : i32
    %c0_i32_0 = arith.constant 0 : i32
    return %arg0, %c0_i32 : i32, i32
  }
  func.func @transform_1(%arg0: i32) -> (i32, i32) {
    %c0_i32 = arith.constant 0 : i32
    %c0_i32_0 = arith.constant 0 : i32
    %c0_i32_1 = arith.constant 0 : i32
    return %c0_i32, %c0_i32_0 : i32, i32
  }
  func.func @transform_2(%arg0: i32) -> (i32, i32) {
    %c0_i32 = arith.constant 0 : i32
    %c0_i32_0 = arith.constant 0 : i32
    return %arg0, %c0_i32 : i32, i32
  }
}

</mosaic_0001>

<llo_original>
// kernel: tpu_custom_call.1
$region0: #{tpu_custom_call.1}
  #allocation0 [shape = 'u32[]', space=smem, size = 0x4, offset = 0x4, fixed_abs, tag = 'smem constant byte address 0x4 - core index']
  #allocation1 [shape = 'u32[72,128]{1,0:T(1,128)}', space=vmem, size = 0x9000, scoped, tag = 'internal scratch']
  %s0 = inlined_call_operand.vmem [shape: f32[768,6], index: 0, kind: input, shape index: {}]
  %s1 = inlined_call_operand.vmem [shape: bf16[6,32], index: 1, kind: input, shape index: {}]
  %s2 = inlined_call_operand.vmem [shape: bf16[768,32], index: 2, kind: output, shape index: {}]
  %s3 = sld [smem:[#allocation0]]
  $region41: #{tpu_custom_call.1} parent=0
    _
  %s5 = ssub.s32 1, %s3
  %s6 = scalar_select 0, %s5, %s3
  loop: start=0, step=1, limit=5
  $region2: #{tpu_custom_call.1} parent=0 // loop_pre_header
    _
  $region3: #{tpu_custom_call.1} parent=0 // loop_header
    %s8 = sphi 0, %s12
    %p9 = scmp.ge.s32.totalorder %s8, 5
    %s18 = sphi 0, %s20
    %s21 = sphi 0, %s18
    %s22 = sphi 0, %s21
    %s38 = sphi 0, %s22
    %s42 = sphi 0, %s42
    %s44 = sphi 0, %s42
    %s45 = sphi 0, %s44
    %s59 = sphi 0, %s45
    %s65 = sphi 0, %s67
    %s68 = sphi 0, %s65
    %s69 = sphi 0, %s68
    %s85 = sphi 0, %s69
  $region4: #{tpu_custom_call.1} parent=0 // loop_header_branch
    %11 = sbr.rel (%p9) target = $region8
  $region5: #{tpu_custom_call.1} parent=0 // loop_body
    %s13 = ssub.s32 %s8, 1
    %s14 = ssub.s32 %s8, 2
    %s15 = sadd.s32 %s8, 1
    %s16 = ssub.s32 %s8, %s15
    %p17 = scmp.eq.s32.totalorder %s16, 0
    %s19 = sadd.s32 %s18, 1
    %s20 = scalar_select %p17, %s18, %s19
    %p23 = pneg %p17
    %p24 = scmp.eq.s32.totalorder %s8, 2
    %p25 = por %p23, %p24
    %p26 = scmp.ne.s32.totalorder %s18, %s21
    %p27 = scmp.eq.s32.totalorder %s8, 0
    %p28 = por %p26, %p27
    %p29 = scmp.ne.s32.totalorder %s18, %s21
    %p30 = scmp.eq.s32.totalorder %s13, 2
    %p31 = por %p29, %p30
    %p32 = scmp.ne.s32.totalorder %s21, %s22
    %p33 = scmp.eq.s32.totalorder %s13, 0
    %p34 = por %p32, %p33
    %p35 = scmp.ne.s32.totalorder %s21, %s22
    %p36 = scmp.eq.s32.totalorder %s14, 2
    %p37 = por %p35, %p36
    %p39 = scmp.ne.s32.totalorder %s22, %s38
    %p40 = scmp.eq.s32.totalorder %s14, 0
    %p41 = por %p39, %p40
    %s43 = sadd.s32 %s42, 1
    %p46 = scmp.eq.s32.totalorder %s8, 2
    %p47 = scmp.ne.s32.totalorder %s42, %s44
    %p48 = scmp.eq.s32.totalorder %s8, 0
    %p49 = por %p47, %p48
    %p50 = scmp.ne.s32.totalorder %s42, %s44
    %p51 = scmp.eq.s32.totalorder %s13, 2
    %p52 = por %p50, %p51
    %p53 = scmp.ne.s32.totalorder %s44, %s45
    %p54 = scmp.eq.s32.totalorder %s13, 0
    %p55 = por %p53, %p54
    %p56 = scmp.ne.s32.totalorder %s44, %s45
    %p57 = scmp.eq.s32.totalorder %s14, 2
    %p58 = por %p56, %p57
    %p60 = scmp.ne.s32.totalorder %s45, %s59
    %p61 = scmp.eq.s32.totalorder %s14, 0
    %p62 = por %p60, %p61
    %s63 = ssub.s32 %s8, %s15
    %p64 = scmp.eq.s32.totalorder %s63, 0
    %s66 = sadd.s32 %s65, 1
    %s67 = scalar_select %p64, %s65, %s66
    %p70 = pneg %p64
    %p71 = scmp.eq.s32.totalorder %s8, 2
    %p72 = por %p70, %p71
    %p73 = scmp.ne.s32.totalorder %s65, %s68
    %p74 = scmp.eq.s32.totalorder %s8, 0
    %p75 = por %p73, %p74
    %p76 = scmp.ne.s32.totalorder %s65, %s68
    %p77 = scmp.eq.s32.totalorder %s13, 2
    %p78 = por %p76, %p77
    %p79 = scmp.ne.s32.totalorder %s68, %s69
    %p80 = scmp.eq.s32.totalorder %s13, 0
    %p81 = por %p79, %p80
    %p82 = scmp.ne.s32.totalorder %s68, %s69
    %p83 = scmp.eq.s32.totalorder %s14, 2
    %p84 = por %p82, %p83
    %p86 = scmp.ne.s32.totalorder %s69, %s85
    %p87 = scmp.eq.s32.totalorder %s14, 0
    %p88 = por %p86, %p87
    %p89 = scmp.le.s32.totalorder 1, %s8
    %p90 = scmp.lt.s32.totalorder %s8, 4
    %p91 = pnand %p89, %p90
    %p92 = pneg %p91
    // Predicated region
    $region9: #{tpu_custom_call.1} parent=5 // pred_check
      _
    $region10: #{tpu_custom_call.1} parent=5 // pred_check_branch
      %94 = sbr.rel (%p91) target = $region12
    $region11: #{tpu_custom_call.1} parent=5 // pred_region
      %s95 = ssub.s32 %s8, 1
      // Predicated region
      $region13: #{tpu_custom_call.1} parent=11 // pred_check
        %p96 = pneg %p55
      $region14: #{tpu_custom_call.1} parent=11 // pred_check_branch
        %98 = sbr.rel (%p96) target = $region16
      $region15: #{tpu_custom_call.1} parent=11 // pred_region
        _
      $region16: #{tpu_custom_call.1} parent=11 // pred_fallthru
        _
    $region12: #{tpu_custom_call.1} parent=5 // pred_fallthru
      _
    %p99 = scmp.lt.s32.totalorder %s8, 3
    // Predicated region
    $region17: #{tpu_custom_call.1} parent=5 // pred_check
      %p100 = pneg %p99
    $region18: #{tpu_custom_call.1} parent=5 // pred_check_branch
      %102 = sbr.rel (%p100) target = $region20
    $region19: #{tpu_custom_call.1} parent=5 // pred_region
      // Predicated region
      $region21: #{tpu_custom_call.1} parent=19 // pred_check
        %p103 = pneg %p28
      $region22: #{tpu_custom_call.1} parent=19 // pred_check_branch
        %105 = sbr.rel (%p103) target = $region24
      $region23: #{tpu_custom_call.1} parent=19 // pred_region
        %s106 = smul.u32 32, %s8
        %p107 = scmp.lt.s32.totalorder %s106, 95
        %s108 = scalar_select %p107, %s106, 95
        %s109 = smul.addr %s108, 8
        %s110 = scalar_lea.vmem %s0, %s109
        %s111 = smul.u32 32, %s8
      $region24: #{tpu_custom_call.1} parent=19 // pred_fallthru
        _
    $region20: #{tpu_custom_call.1} parent=5 // pred_fallthru
      _
    %p112 = scmp.le.s32.totalorder 1, %s8
    %p113 = scmp.lt.s32.totalorder %s8, 4
    %p114 = pnand %p112, %p113
    %p115 = pneg %p114
    // Predicated region
    $region25: #{tpu_custom_call.1} parent=5 // pred_check
      _
    $region26: #{tpu_custom_call.1} parent=5 // pred_check_branch
      %117 = sbr.rel (%p114) target = $region28
    $region27: #{tpu_custom_call.1} parent=5 // pred_region
      %s118 = ssub.s32 %s8, 1
      %s119 = smul.u32 32, %s13
      %p120 = scmp.lt.s32.totalorder %s119, 95
      %s121 = scalar_select %p120, %s119, 95
      %s122 = smul.addr %s121, 8
      %s123 = scalar_lea.vmem %s0, %s122
      %p124 = pneg %p34
      %p125 = pneg %p31
      %p126 = pneg %p55
      %p127 = pneg %p52
      %p128 = pneg %p81
      %p129 = pneg %p78
      %s130 = smul.u32 32, %s13
      %p131 = scmp.lt.s32.totalorder %s130, 95
      %s132 = scalar_select %p131, %s130, 95
      %s133 = smul.addr %s132, 4
      %s134 = scalar_lea.vmem %s2, %s133
      %s135 = smul.u32 32, %s13
      %p136 = scmp.lt.s32.totalorder %s135, 95
      %s137 = scalar_select %p136, %s135, 95
      %s138 = smul.addr %s137, 8
      %s139 = scalar_lea.vmem %s0, %s138
      %s140 = smul.u32 32, %s13
      %s141 = smul.u32 32, %s13
      %p142 = scmp.lt.s32.totalorder %s141, 95
      %s143 = scalar_select %p142, %s141, 95
      %s144 = smul.addr %s143, 4
      %s145 = scalar_lea.vmem %s2, %s144
      %s146 = smul.u32 32, %s13
      %v148 = vld [vmem:[%s139] sm:$0xff]
      %v149 = vld [vmem:[%s139 + $0x8] sm:$0xff]
      %v150 = vld [vmem:[%s139 + $0x10] sm:$0xff]
      %v151 = vld [vmem:[%s139 + $0x18] sm:$0xff]
      %v152 = vld [vmem:[%s139 + $0x20] sm:$0xff]
      %v153 = vld [vmem:[%s139 + $0x28] sm:$0xff]
      %v154 = vld [vmem:[%s139 + $0x30] sm:$0xff]
      %v155 = vld [vmem:[%s139 + $0x38] sm:$0xff]
      %v156 = vld [vmem:[%s139 + $0x40] sm:$0xff]
      %v157 = vld [vmem:[%s139 + $0x48] sm:$0xff]
      %v158 = vld [vmem:[%s139 + $0x50] sm:$0xff]
      %v159 = vld [vmem:[%s139 + $0x58] sm:$0xff]
      %v160 = vld [vmem:[%s139 + $0x60] sm:$0xff]
      %v161 = vld [vmem:[%s139 + $0x68] sm:$0xff]
      %v162 = vld [vmem:[%s139 + $0x70] sm:$0xff]
      %v163 = vld [vmem:[%s139 + $0x78] sm:$0xff]
      %v164 = vld [vmem:[%s139 + $0x80] sm:$0xff]
      %v165 = vld [vmem:[%s139 + $0x88] sm:$0xff]
      %v166 = vld [vmem:[%s139 + $0x90] sm:$0xff]
      %v167 = vld [vmem:[%s139 + $0x98] sm:$0xff]
      %v168 = vld [vmem:[%s139 + $0xa0] sm:$0xff]
      %v169 = vld [vmem:[%s139 + $0xa8] sm:$0xff]
      %v170 = vld [vmem:[%s139 + $0xb0] sm:$0xff]
      %v171 = vld [vmem:[%s139 + $0xb8] sm:$0xff]
      %v172 = vld [vmem:[%s139 + $0xc0] sm:$0xff]
      %v173 = vld [vmem:[%s139 + $0xc8] sm:$0xff]
      %v174 = vld [vmem:[%s139 + $0xd0] sm:$0xff]
      %v175 = vld [vmem:[%s139 + $0xd8] sm:$0xff]
      %v176 = vld [vmem:[%s139 + $0xe0] sm:$0xff]
      %v177 = vld [vmem:[%s139 + $0xe8] sm:$0xff]
      %v178 = vld [vmem:[%s139 + $0xf0] sm:$0xff]
      %v179 = vld [vmem:[%s139 + $0xf8] sm:$0xff]
      %v180 = vpack.c.bf16 %v149, %v148
      %v181 = vpack.c.bf16 %v151, %v150
      %v182 = vpack.c.bf16 %v153, %v152
      %v183 = vpack.c.bf16 %v155, %v154
      %v184 = vpack.c.bf16 %v157, %v156
      %v185 = vpack.c.bf16 %v159, %v158
      %v186 = vpack.c.bf16 %v161, %v160
      %v187 = vpack.c.bf16 %v163, %v162
      %v188 = vpack.c.bf16 %v165, %v164
      %v189 = vpack.c.bf16 %v167, %v166
      %v190 = vpack.c.bf16 %v169, %v168
      %v191 = vpack.c.bf16 %v171, %v170
      %v192 = vpack.c.bf16 %v173, %v172
      %v193 = vpack.c.bf16 %v175, %v174
      %v194 = vpack.c.bf16 %v177, %v176
      %v195 = vpack.c.bf16 %v179, %v178
      %v196 = vld [vmem:[%s1] sm:$0x7]
      %vm197 = vcmask 48128
      %v199 = vsel %vm197, %v180, 0
      %v202 = vsel %vm197, %v181, 0
      %v205 = vsel %vm197, %v182, 0
      %v208 = vsel %vm197, %v183, 0
      %v211 = vsel %vm197, %v184, 0
      %v214 = vsel %vm197, %v185, 0
      %v217 = vsel %vm197, %v186, 0
      %v220 = vsel %vm197, %v187, 0
      %v223 = vsel %vm197, %v188, 0
      %v226 = vsel %vm197, %v189, 0
      %v229 = vsel %vm197, %v190, 0
      %v232 = vsel %vm197, %v191, 0
      %v235 = vsel %vm197, %v192, 0
      %v238 = vsel %vm197, %v193, 0
      %v241 = vsel %vm197, %v194, 0
      %v244 = vsel %vm197, %v195, 0
      %vm246 = vcmask 1042432
      %v248 = vsel %vm246, %v196, 0
      %250 = vmatpush.bf16.msra.mxu0 0
      %251 = vmatpush.bf16.msra.mxu0 0
      %252 = vmatpush.bf16.msra.mxu0 0
      %253 = vmatpush.bf16.msra.mxu0 0
      %254 = vmatpush.bf16.msra.mxu0 0
      %255 = vmatpush.bf16.msra.mxu0 0
      %256 = vmatpush.bf16.msra.mxu0 0
      %257 = vmatpush.bf16.msra.mxu0 %v248
      %258 = vmatmul.bf16.gmra.mxu0 %v199
      %v259 = vpop.f32.mrf.mxu0
      %v260 = vadd.f32 0.0, %v259
      %v261 = vpop.f32.mrf.mxu0
      %v262 = vadd.f32 0.0, %v261
      %263 = vmatmul.bf16.gmra.mxu0 %v202
      %v264 = vpop.f32.mrf.mxu0
      %v265 = vadd.f32 0.0, %v264
      %v266 = vpop.f32.mrf.mxu0
      %v267 = vadd.f32 0.0, %v266
      %268 = vmatmul.bf16.gmra.mxu0 %v205
      %v269 = vpop.f32.mrf.mxu0
      %v270 = vadd.f32 0.0, %v269
      %v271 = vpop.f32.mrf.mxu0
      %v272 = vadd.f32 0.0, %v271
      %273 = vmatmul.bf16.gmra.mxu0 %v208
      %v274 = vpop.f32.mrf.mxu0
      %v275 = vadd.f32 0.0, %v274
      %v276 = vpop.f32.mrf.mxu0
      %v277 = vadd.f32 0.0, %v276
      %278 = vmatmul.bf16.gmra.mxu0 %v211
      %v279 = vpop.f32.mrf.mxu0
      %v280 = vadd.f32 0.0, %v279
      %v281 = vpop.f32.mrf.mxu0
      %v282 = vadd.f32 0.0, %v281
      %283 = vmatmul.bf16.gmra.mxu0 %v214
      %v284 = vpop.f32.mrf.mxu0
      %v285 = vadd.f32 0.0, %v284
      %v286 = vpop.f32.mrf.mxu0
      %v287 = vadd.f32 0.0, %v286
      %288 = vmatmul.bf16.gmra.mxu0 %v217
      %v289 = vpop.f32.mrf.mxu0
      %v290 = vadd.f32 0.0, %v289
      %v291 = vpop.f32.mrf.mxu0
      %v292 = vadd.f32 0.0, %v291
      %293 = vmatmul.bf16.gmra.mxu0 %v220
      %v294 = vpop.f32.mrf.mxu0
      %v295 = vadd.f32 0.0, %v294
      %v296 = vpop.f32.mrf.mxu0
      %v297 = vadd.f32 0.0, %v296
      %298 = vmatmul.bf16.gmra.mxu0 %v223
      %v299 = vpop.f32.mrf.mxu0
      %v300 = vadd.f32 0.0, %v299
      %v301 = vpop.f32.mrf.mxu0
      %v302 = vadd.f32 0.0, %v301
      %303 = vmatmul.bf16.gmra.mxu0 %v226
      %v304 = vpop.f32.mrf.mxu0
      %v305 = vadd.f32 0.0, %v304
      %v306 = vpop.f32.mrf.mxu0
      %v307 = vadd.f32 0.0, %v306
      %308 = vmatmul.bf16.gmra.mxu0 %v229
      %v309 = vpop.f32.mrf.mxu0
      %v310 = vadd.f32 0.0, %v309
      %v311 = vpop.f32.mrf.mxu0
      %v312 = vadd.f32 0.0, %v311
      %313 = vmatmul.bf16.gmra.mxu0 %v232
      %v314 = vpop.f32.mrf.mxu0
      %v315 = vadd.f32 0.0, %v314
      %v316 = vpop.f32.mrf.mxu0
      %v317 = vadd.f32 0.0, %v316
      %318 = vmatmul.bf16.gmra.mxu0 %v235
      %v319 = vpop.f32.mrf.mxu0
      %v320 = vadd.f32 0.0, %v319
      %v321 = vpop.f32.mrf.mxu0
      %v322 = vadd.f32 0.0, %v321
      %323 = vmatmul.bf16.gmra.mxu0 %v238
      %v324 = vpop.f32.mrf.mxu0
      %v325 = vadd.f32 0.0, %v324
      %v326 = vpop.f32.mrf.mxu0
      %v327 = vadd.f32 0.0, %v326
      %328 = vmatmul.bf16.gmra.mxu0 %v241
      %v329 = vpop.f32.mrf.mxu0
      %v330 = vadd.f32 0.0, %v329
      %v331 = vpop.f32.mrf.mxu0
      %v332 = vadd.f32 0.0, %v331
      %333 = vmatmul.bf16.gmra.mxu0 %v244
      %v334 = vpop.f32.mrf.mxu0
      %v335 = vadd.f32 0.0, %v334
      %v336 = vpop.f32.mrf.mxu0
      %v337 = vadd.f32 0.0, %v336
      %338 = vdwg.mxu0
      %v339 = vpack.c.bf16 %v260, %v260
      %v340 = vpack.c.bf16 %v262, %v262
      %v341 = vpack.c.bf16 %v265, %v265
      %v342 = vpack.c.bf16 %v267, %v267
      %v343 = vpack.c.bf16 %v270, %v270
      %v344 = vpack.c.bf16 %v272, %v272
      %v345 = vpack.c.bf16 %v275, %v275
      %v346 = vpack.c.bf16 %v277, %v277
      %v347 = vpack.c.bf16 %v280, %v280
      %v348 = vpack.c.bf16 %v282, %v282
      %v349 = vpack.c.bf16 %v285, %v285
      %v350 = vpack.c.bf16 %v287, %v287
      %v351 = vpack.c.bf16 %v290, %v290
      %v352 = vpack.c.bf16 %v292, %v292
      %v353 = vpack.c.bf16 %v295, %v295
      %v354 = vpack.c.bf16 %v297, %v297
      %v355 = vpack.c.bf16 %v300, %v300
      %v356 = vpack.c.bf16 %v302, %v302
      %v357 = vpack.c.bf16 %v305, %v305
      %v358 = vpack.c.bf16 %v307, %v307
      %v359 = vpack.c.bf16 %v310, %v310
      %v360 = vpack.c.bf16 %v312, %v312
      %v361 = vpack.c.bf16 %v315, %v315
      %v362 = vpack.c.bf16 %v317, %v317
      %v363 = vpack.c.bf16 %v320, %v320
      %v364 = vpack.c.bf16 %v322, %v322
      %v365 = vpack.c.bf16 %v325, %v325
      %v366 = vpack.c.bf16 %v327, %v327
      %v367 = vpack.c.bf16 %v330, %v330
      %v368 = vpack.c.bf16 %v332, %v332
      %v369 = vpack.c.bf16 %v335, %v335
      %v370 = vpack.c.bf16 %v337, %v337
      %vm371 = vcmask 257024
      %372 = vst.msk [vmem:[%s145] sm:$0xf] %vm371, %v339
      %373 = vst.msk [vmem:[%s145 + $0x4] sm:$0xf] %vm371, %v340
      %374 = vst.msk [vmem:[%s145 + $0x8] sm:$0xf] %vm371, %v341
      %375 = vst.msk [vmem:[%s145 + $0xc] sm:$0xf] %vm371, %v342
      %376 = vst.msk [vmem:[%s145 + $0x10] sm:$0xf] %vm371, %v343
      %377 = vst.msk [vmem:[%s145 + $0x14] sm:$0xf] %vm371, %v344
      %378 = vst.msk [vmem:[%s145 + $0x18] sm:$0xf] %vm371, %v345
      %379 = vst.msk [vmem:[%s145 + $0x1c] sm:$0xf] %vm371, %v346
      %380 = vst.msk [vmem:[%s145 + $0x20] sm:$0xf] %vm371, %v347
      %381 = vst.msk [vmem:[%s145 + $0x24] sm:$0xf] %vm371, %v348
      %382 = vst.msk [vmem:[%s145 + $0x28] sm:$0xf] %vm371, %v349
      %383 = vst.msk [vmem:[%s145 + $0x2c] sm:$0xf] %vm371, %v350
      %384 = vst.msk [vmem:[%s145 + $0x30] sm:$0xf] %vm371, %v351
      %385 = vst.msk [vmem:[%s145 + $0x34] sm:$0xf] %vm371, %v352
      %386 = vst.msk [vmem:[%s145 + $0x38] sm:$0xf] %vm371, %v353
      %387 = vst.msk [vmem:[%s145 + $0x3c] sm:$0xf] %vm371, %v354
      %388 = vst.msk [vmem:[%s145 + $0x40] sm:$0xf] %vm371, %v355
      %389 = vst.msk [vmem:[%s145 + $0x44] sm:$0xf] %vm371, %v356
      %390 = vst.msk [vmem:[%s145 + $0x48] sm:$0xf] %vm371, %v357
      %391 = vst.msk [vmem:[%s145 + $0x4c] sm:$0xf] %vm371, %v358
      %392 = vst.msk [vmem:[%s145 + $0x50] sm:$0xf] %vm371, %v359
      %393 = vst.msk [vmem:[%s145 + $0x54] sm:$0xf] %vm371, %v360
      %394 = vst.msk [vmem:[%s145 + $0x58] sm:$0xf] %vm371, %v361
      %395 = vst.msk [vmem:[%s145 + $0x5c] sm:$0xf] %vm371, %v362
      %396 = vst.msk [vmem:[%s145 + $0x60] sm:$0xf] %vm371, %v363
      %397 = vst.msk [vmem:[%s145 + $0x64] sm:$0xf] %vm371, %v364
      %398 = vst.msk [vmem:[%s145 + $0x68] sm:$0xf] %vm371, %v365
      %399 = vst.msk [vmem:[%s145 + $0x6c] sm:$0xf] %vm371, %v366
      %400 = vst.msk [vmem:[%s145 + $0x70] sm:$0xf] %vm371, %v367
      %401 = vst.msk [vmem:[%s145 + $0x74] sm:$0xf] %vm371, %v368
      %402 = vst.msk [vmem:[%s145 + $0x78] sm:$0xf] %vm371, %v369
      %403 = vst.msk [vmem:[%s145 + $0x7c] sm:$0xf] %vm371, %v370
      %s404 = smul.u32 32, %s13
      %p405 = scmp.lt.s32.totalorder %s404, 95
      %s406 = scalar_select %p405, %s404, 95
      %s407 = smul.addr %s406, 4
      %s408 = scalar_lea.vmem %s2, %s407
      // Predicated region
      $region29: #{tpu_custom_call.1} parent=27 // pred_check
        %p409 = pneg %p78
      $region30: #{tpu_custom_call.1} parent=27 // pred_check_branch
        %411 = sbr.rel (%p409) target = $region32
      $region31: #{tpu_custom_call.1} parent=27 // pred_region
        %s412 = smul.u32 32, %s13
      $region32: #{tpu_custom_call.1} parent=27 // pred_fallthru
        _
    $region28: #{tpu_custom_call.1} parent=5 // pred_fallthru
      _
    %p413 = scmp.le.s32.totalorder 2, %s8
    // Predicated region
    $region33: #{tpu_custom_call.1} parent=5 // pred_check
      %p414 = pneg %p413
    $region34: #{tpu_custom_call.1} parent=5 // pred_check_branch
      %416 = sbr.rel (%p414) target = $region36
    $region35: #{tpu_custom_call.1} parent=5 // pred_region
      %s417 = ssub.s32 %s8, 2
      // Predicated region
      $region37: #{tpu_custom_call.1} parent=35 // pred_check
        %p418 = pneg %p84
      $region38: #{tpu_custom_call.1} parent=35 // pred_check_branch
        %420 = sbr.rel (%p418) target = $region40
      $region39: #{tpu_custom_call.1} parent=35 // pred_region
        %s421 = smul.u32 32, %s14
        %p422 = scmp.lt.s32.totalorder %s421, 95
        %s423 = scalar_select %p422, %s421, 95
        %s424 = smul.addr %s423, 4
        %s425 = scalar_lea.vmem %s2, %s424
      $region40: #{tpu_custom_call.1} parent=35 // pred_fallthru
        _
    $region36: #{tpu_custom_call.1} parent=5 // pred_fallthru
      _
  $region6: #{tpu_custom_call.1} parent=0 // loop_footer
    %s12 = sadd.s32 1, %s8
  $region7: #{tpu_custom_call.1} parent=0 // loop_footer_branch
    %7 = sbr.rel target = $region3
  $region8: #{tpu_custom_call.1} parent=0 // loop_exit
    _

</llo_original>
